<compile_context>
chip_gen: v7x
topology: tpu7x:2x2x1
jax: 0.10.0
libtpu: 0.0.40
codegen_flags: <defaults>
</compile_context>

<pallas_src>
import numpy as np
import jax
import jax.numpy as jnp
from jax.experimental import pallas as pl
from jax.experimental.pallas import tpu as pltpu


def _dequant_kernel(x_ref, noise_ref, gain_ref, o_ref):
    # out = x + (U(0,1) - 0.5) * gain   with gain = 1/scale on discrete columns,
    # 0 elsewhere (exact pass-through).  gain_ref is (1, Dp) and broadcasts
    # over the batch sublanes.
    o_ref[...] = x_ref[...] + (noise_ref[...] - jnp.float32(0.5)) * gain_ref[...]


def _round_up(n, m):
    return ((n + m - 1) // m) * m


def selective_dequantization(x, discrete_indices, discrete_shift, discrete_scale,
                             key, *, block_rows=512):
    """x: (B, D) float32.  Adds uniform noise (in scaled space) only to the
    columns listed in discrete_indices; other columns pass through unchanged."""
    x = jnp.asarray(x, jnp.float32)
    B, D = x.shape

    # ---- host-side fused parameters: noise_gain = mask / scale --------------
    # (discrete_shift cancels algebraically and is not needed at runtime)
    Dp = _round_up(max(D, 128), 128)                    # lane-dense last dim
    gain_np = np.zeros((1, Dp), dtype=np.float32)
    idxs = np.asarray(discrete_indices).reshape(-1)
    scales = np.asarray(discrete_scale, dtype=np.float32).reshape(-1)
    for i, idx in enumerate(idxs):
        gain_np[0, int(idx)] = np.float32(1.0) / scales[i]
    gain = jnp.asarray(gain_np)

    # ---- batch tiling (sublane axis) ----------------------------------------
    # block_rows=512 keeps (x + noise + out) * double-buffers well under the
    # 32 MiB scoped-VMEM default even on v7x (64 MiB physical) for Dp ~ 1-2K.
    TB = min(block_rows, _round_up(B, 8))
    Bp = _round_up(B, TB)
    grid = (Bp // TB,)

    # Pad to (Bp, Dp); padded columns have gain == 0 and are sliced away.
    xp = jnp.pad(x, ((0, Bp - B), (0, Dp - D)))

    # Uniform noise in [0, 1), one value per (padded) element.  Distinct per
    # row-tile by construction, so no per-tile reseeding concern.
    noise = jax.random.uniform(key, (Bp, Dp), dtype=jnp.float32)

    cost = pl.CostEstimate(
        flops=2 * Bp * Dp,
        transcendentals=0,
        bytes_accessed=4 * Bp * Dp * 4,   # x + noise in, out written (+gain, tiny)
    )

    out = pl.pallas_call(
        _dequant_kernel,
        out_shape=jax.ShapeDtypeStruct((Bp, Dp), jnp.float32),
        grid_spec=pltpu.PrefetchScalarGridSpec(
            num_scalar_prefetch=0,
            grid=grid,
            in_specs=[
                pl.BlockSpec((TB, Dp), lambda i: (i, 0)),   # x row-tile
                pl.BlockSpec((TB, Dp), lambda i: (i, 0)),   # noise row-tile
                pl.BlockSpec((1, Dp), lambda i: (0, 0)),    # gain (stays resident)
            ],
            out_specs=pl.BlockSpec((TB, Dp), lambda i: (i, 0)),
        ),
        compiler_params=pltpu.CompilerParams(
            dimension_semantics=("parallel",),   # shard row-tiles across v7x TCs
        ),
        cost_estimate=cost,
    )(xp, noise, gain)

    return out[:B, :D]


if __name__ == "__main__":
    key = jax.random.PRNGKey(0)
    k_x, k_noise = jax.random.split(key)

    # Small shapes consistent with the module: batch=8 samples, 32 features.
    B, D = 8, 32
    x = jax.random.normal(k_x, (B, D), dtype=jnp.float32)

    # Deterministic "parameters" (module __init__ args).
    discrete_indices = np.array([1, 5, 12, 30], dtype=np.int32)
    discrete_shift = np.array([0.5, -1.0, 0.0, 2.0], dtype=np.float32)
    discrete_scale = np.array([2.0, 1.0, 4.0, 0.5], dtype=np.float32)

    out = selective_dequantization(x, discrete_indices, discrete_shift,
                                   discrete_scale, k_noise)
    out = jax.block_until_ready(out)

    out_np = np.asarray(out)
    x_np = np.asarray(x)

    # Non-discrete columns must pass through unchanged.
    non_discrete = np.setdiff1d(np.arange(D), discrete_indices)
    assert np.allclose(out_np[:, non_discrete], x_np[:, non_discrete], rtol=0, atol=0), \
        "non-discrete columns modified"

    # Discrete columns: out = x + (U(0,1)-0.5)/scale, so |delta| <= 0.5/scale.
    for i, idx in enumerate(discrete_indices):
        delta = out_np[:, idx] - x_np[:, idx]
        bound = 0.5 / float(discrete_scale[i]) + 1e-5
        assert np.all(np.abs(delta) <= bound), f"noise out of range for column {idx}"

    print("KERNEL_OK")
</pallas_src>

<mosaic_0001>
module attributes {stable_mosaic.version = 11 : i64} {
  func.func @_dequant_kernel(%arg0: i32, %arg1: memref<8x128xf32, #tpu.memory_space<vmem>>, %arg2: memref<8x128xf32, #tpu.memory_space<vmem>>, %arg3: memref<1x128xf32, #tpu.memory_space<vmem>>, %arg4: memref<8x128xf32, #tpu.memory_space<vmem>>) attributes {dimension_semantics = [#tpu.dimension_semantics<parallel>], iteration_bounds = array<i64: 1>, scalar_prefetch = 0 : i64, scratch_operands = 0 : i64, tpu.core_type = #tpu.core_type<tc>, window_params = [{transform_indices = @transform_0, window_bounds = array<i64: 8, 128>}, {transform_indices = @transform_1, window_bounds = array<i64: 8, 128>}, {pipeline_mode = #tpu.pipeline_mode<synchronous>, transform_indices = @transform_2, window_bounds = array<i64: 1, 128>}, {transform_indices = @transform_3, window_bounds = array<i64: 8, 128>}]} {
    %c0 = arith.constant 0 : index
    %c0_0 = arith.constant 0 : index
    %0 = vector.load %arg1[%c0, %c0_0] : memref<8x128xf32, #tpu.memory_space<vmem>>, vector<8x128xf32>
    %c0_1 = arith.constant 0 : index
    %c0_2 = arith.constant 0 : index
    %1 = vector.load %arg2[%c0_1, %c0_2] : memref<8x128xf32, #tpu.memory_space<vmem>>, vector<8x128xf32>
    %cst = arith.constant 5.000000e-01 : f32
    %2 = vector.broadcast %cst : f32 to vector<8x128xf32>
    %3 = arith.subf %1, %2 : vector<8x128xf32>
    %c0_3 = arith.constant 0 : index
    %c0_4 = arith.constant 0 : index
    %4 = vector.load %arg3[%c0_3, %c0_4] : memref<1x128xf32, #tpu.memory_space<vmem>>, vector<1x128xf32>
    %5 = vector.broadcast %4 : vector<1x128xf32> to vector<8x128xf32>
    %6 = arith.mulf %3, %5 : vector<8x128xf32>
    %7 = arith.addf %0, %6 : vector<8x128xf32>
    %c0_5 = arith.constant 0 : index
    %c0_6 = arith.constant 0 : index
    %8 = vector.load %arg4[%c0_5, %c0_6] : memref<8x128xf32, #tpu.memory_space<vmem>>, vector<8x128xf32>
    tpu.vector_store %arg4[%c0_5, %c0_6], %7 {strides = array<i32>} : memref<8x128xf32, #tpu.memory_space<vmem>>, vector<8x128xf32>,
    return
  }
  func.func @transform_0(%arg0: i32) -> (i32, i32) {
    %c0_i32 = arith.constant 0 : i32
    %c0_i32_0 = arith.constant 0 : i32
    return %arg0, %c0_i32 : i32, i32
  }
  func.func @transform_1(%arg0: i32) -> (i32, i32) {
    %c0_i32 = arith.constant 0 : i32
    %c0_i32_0 = arith.constant 0 : i32
    return %arg0, %c0_i32 : i32, i32
  }
  func.func @transform_2(%arg0: i32) -> (i32, i32) {
    %c0_i32 = arith.constant 0 : i32
    %c0_i32_0 = arith.constant 0 : i32
    %c0_i32_1 = arith.constant 0 : i32
    return %c0_i32, %c0_i32_0 : i32, i32
  }
  func.func @transform_3(%arg0: i32) -> (i32, i32) {
    %c0_i32 = arith.constant 0 : i32
    %c0_i32_0 = arith.constant 0 : i32
    return %arg0, %c0_i32 : i32, i32
  }
}

</mosaic_0001>

<llo_original>
// kernel: tpu_custom_call.1
$region0: #{tpu_custom_call.1}
  #allocation0 [shape = 'u32[]', space=smem, size = 0x4, offset = 0x4, fixed_abs, tag = 'smem constant byte address 0x4 - core index']
  #allocation1 [shape = 'u32[144,128]{1,0:T(1,128)}', space=vmem, size = 0x12000, scoped, tag = 'internal scratch']
  %s0 = inlined_call_operand.hbm [shape: f32[8,128], index: 0, kind: input, shape index: {}]
  %s1 = inlined_call_operand.hbm [shape: f32[8,128], index: 1, kind: input, shape index: {}]
  %s2 = inlined_call_operand.vmem [shape: f32[1,128], index: 2, kind: input, shape index: {}]
  %s3 = inlined_call_operand.hbm [shape: f32[8,128], index: 3, kind: output, shape index: {}]
  %s4 = sld [smem:[#allocation0]]
  $region30: #{tpu_custom_call.1} parent=0
    _
  %s6 = ssub.s32 1, %s4
  %s7 = scalar_select 0, %s6, %s4
  $region1: #{tpu_custom_call.1} parent=0
    #allocation2 [shape = 'u8[4096]{0}', space=vmem, size = 0x1000, scoped, tag = 'input window, operand 0, single buffered']
    #allocation3 [shape = 's32[1]{0}', space=sflag, size = 0x4, scoped, tag = 'scoped memory for tpu_custom_call.1']
    #allocation4 [shape = 's32[1]{0}', space=sflag, size = 0x4, scoped, tag = 'scoped memory for tpu_custom_call.1']
    #allocation5 [shape = 'u8[4096]{0}', space=vmem, size = 0x1000, scoped, tag = 'input window, operand 1, single buffered']
    #allocation6 [shape = 's32[1]{0}', space=sflag, size = 0x4, scoped, tag = 'scoped memory for tpu_custom_call.1']
    #allocation7 [shape = 'u8[4096]{0}', space=vmem, size = 0x1000, scoped, tag = 'output window, operand 0, single buffered']
    %8 = vsyncpa [#allocation3], 0
    %9 = vsyncpa [#allocation6], 0
    %10 = vsyncpa [#allocation4], 0
    // Predicated region
    $region2: #{tpu_custom_call.1} parent=1 // pred_check
      _
    $region3: #{tpu_custom_call.1} parent=1 // pred_check_branch
      %12 = sbr.rel (0) target = $region5
    $region4: #{tpu_custom_call.1} parent=1 // pred_region
      %s14 = ssub.s32 128, 128
      %15 = vsyncadd [#allocation3], %s14
      %s17 = sshll.u32 [#allocation2], 4
      %s18 = int_to_ptr.vmem [resolvable:$true] %s17
      %20 = dma.hbm_to_vmem [thread:$0]  %s0, 128, %s18, [#allocation3]
    $region5: #{tpu_custom_call.1} parent=1 // pred_fallthru
      _
    // Predicated region
    $region6: #{tpu_custom_call.1} parent=1 // pred_check
      _
    $region7: #{tpu_custom_call.1} parent=1 // pred_check_branch
      %22 = sbr.rel (0) target = $region9
    $region8: #{tpu_custom_call.1} parent=1 // pred_region
      %s24 = ssub.s32 128, 128
      %25 = vsyncadd [#allocation6], %s24
      %s27 = sshll.u32 [#allocation5], 4
      %s28 = int_to_ptr.vmem [resolvable:$true] %s27
      %30 = dma.hbm_to_vmem [thread:$0]  %s1, 128, %s28, [#allocation6]
    $region9: #{tpu_custom_call.1} parent=1 // pred_fallthru
      _
    // Predicated region
    $region10: #{tpu_custom_call.1} parent=1 // pred_check
      _
    $region11: #{tpu_custom_call.1} parent=1 // pred_check_branch
      %32 = sbr.rel (0) target = $region13
    $region12: #{tpu_custom_call.1} parent=1 // pred_region
      _
    $region13: #{tpu_custom_call.1} parent=1 // pred_fallthru
      _
    // Predicated region
    $region14: #{tpu_custom_call.1} parent=1 // pred_check
      _
    $region15: #{tpu_custom_call.1} parent=1 // pred_check_branch
      %34 = sbr.rel (0) target = $region17
    $region16: #{tpu_custom_call.1} parent=1 // pred_region
      %35 = dma.done [#allocation3], 128
    $region17: #{tpu_custom_call.1} parent=1 // pred_fallthru
      _
    // Predicated region
    $region18: #{tpu_custom_call.1} parent=1 // pred_check
      _
    $region19: #{tpu_custom_call.1} parent=1 // pred_check_branch
      %37 = sbr.rel (0) target = $region21
    $region20: #{tpu_custom_call.1} parent=1 // pred_region
      %38 = dma.done [#allocation6], 128
    $region21: #{tpu_custom_call.1} parent=1 // pred_fallthru
      _
    %v39 = vld [vmem:[#allocation2] sm:$0xff]
    %v40 = vld [vmem:[#allocation5] sm:$0xff]
    %v41 = vsub.f32 %v40, 0.5
    %v42 = vld [vmem:[%s2] sm:$0x1]
    %v44 = vlaneseq
    %v45 = vshrl.u32 %v44, 7
    %v46 = vsub.s32 0, %v45
    %v47 = vrot.slane %v42, %v46
    %v49 = vmul.f32 %v41, %v47
    %v50 = vadd.f32 %v39, %v49
    %51 = vst [vmem:[#allocation7] sm:$0xff] %v50
    // Predicated region
    $region22: #{tpu_custom_call.1} parent=1 // pred_check
      _
    $region23: #{tpu_custom_call.1} parent=1 // pred_check_branch
      %53 = sbr.rel (0) target = $region25
    $region24: #{tpu_custom_call.1} parent=1 // pred_region
      %s55 = ssub.s32 128, 128
      %56 = vsyncadd [#allocation4], %s55
      %s58 = sshll.u32 [#allocation7], 4
      %s59 = int_to_ptr.vmem [resolvable:$true] %s58
      %61 = dma.vmem_to_hbm [thread:$0]  %s59, 128, %s3, [#allocation4]
    $region25: #{tpu_custom_call.1} parent=1 // pred_fallthru
      _
    // Predicated region
    $region26: #{tpu_custom_call.1} parent=1 // pred_check
      _
    $region27: #{tpu_custom_call.1} parent=1 // pred_check_branch
      %63 = sbr.rel (0) target = $region29
    $region28: #{tpu_custom_call.1} parent=1 // pred_region
      %64 = dma.done [#allocation4], 128
    $region29: #{tpu_custom_call.1} parent=1 // pred_fallthru
      _
    %65 = vsyncpa [#allocation3], 1
    %66 = vsyncpa [#allocation6], 1
    %67 = vsyncpa [#allocation4], 1

</llo_original>
